<compile_context>
chip_gen: v7x
topology: tpu7x:2x2x1
jax: 0.10.0
libtpu: 0.0.40
codegen_flags: <defaults>
</compile_context>

<pallas_src>
import functools
import math

import jax
import jax.numpy as jnp
from jax.experimental import pallas as pl
from jax.experimental.pallas import tpu as pltpu


# ----------------------------- kernel bodies ------------------------------ #

def _sage_direct_kernel(*refs, n_feat, compute_dtype):
    # refs = (x_0, [x_1], w_0, [w_1], o_ref)
    # x_i : (tile_m, K)   feature dtype (f32 in HBM, cast here)
    # w_i : (K, out_p)    bf16, VMEM-resident across the grid
    # o   : (tile_m, out_p) out_dtype
    x_refs = refs[:n_feat]
    w_refs = refs[n_feat:2 * n_feat]
    o_ref = refs[2 * n_feat]

    acc = jnp.dot(x_refs[0][...].astype(compute_dtype), w_refs[0][...],
                  preferred_element_type=jnp.float32)
    for xr, wr in zip(x_refs[1:], w_refs[1:]):
        acc = acc + jnp.dot(xr[...].astype(compute_dtype), wr[...],
                            preferred_element_type=jnp.float32)
    o_ref[...] = jnp.maximum(acc, 0.0).astype(o_ref.dtype)   # ReLU on f32 acc


def _sage_ktiled_kernel(*refs, n_feat, compute_dtype, k_total, tile_k, mask_k):
    # Same as above but with a K reduction grid axis (axis 1, "arbitrary") and
    # an f32 VMEM accumulator.  `mask_k` is a trace-time flag, only True when
    # tile_k does not divide k_total (ragged last K block -> zero the padding
    # of both the feature and weight tiles so garbage never reaches the MXU).
    x_refs = refs[:n_feat]
    w_refs = refs[n_feat:2 * n_feat]
    o_ref = refs[2 * n_feat]
    acc_ref = refs[2 * n_feat + 1]
    k = pl.program_id(1)

    @pl.when(k == 0)
    def _():
        acc_ref[...] = jnp.zeros_like(acc_ref)

    base = k * tile_k
    for xr, wr in zip(x_refs, w_refs):
        x = xr[...]
        w = wr[...]
        if mask_k:
            col = base + jax.lax.broadcasted_iota(jnp.int32, x.shape, 1)
            x = jnp.where(col < k_total, x, 0)
            row = base + jax.lax.broadcasted_iota(jnp.int32, w.shape, 0)
            w = jnp.where(row < k_total, w, jnp.zeros_like(w))
        acc_ref[...] += jnp.dot(x.astype(compute_dtype), w,
                                preferred_element_type=jnp.float32)

    @pl.when(k == pl.num_programs(1) - 1)
    def _():
        o_ref[...] = jnp.maximum(acc_ref[...], 0.0).astype(o_ref.dtype)


# ------------------------------- wrapper ----------------------------------- #

def _round_up(x, m):
    return ((x + m - 1) // m) * m


def prepare_sage_weights(weight, input_size, gcn=False,
                         compute_dtype=jnp.bfloat16, lane_align=128):
    """One-time weight prep, hoisted out of the forward pass.

    Splits the implicit concat (W_self / W_agg), transposes to (K, out),
    zero-pads the out dim to a lane-dense multiple of `lane_align` and casts
    to the MXU compute dtype.  Returns (w_parts, out_size).
    """
    out_size, feat_dim = weight.shape
    expect = input_size if gcn else 2 * input_size
    assert feat_dim == expect, "weight / feature size mismatch"
    out_p = _round_up(max(out_size, lane_align), lane_align)

    def prep(w_slice):
        w_t = jnp.transpose(w_slice)                       # (K, out_size)
        if out_p != out_size:
            w_t = jnp.pad(w_t, ((0, 0), (0, out_p - out_size)))
        return w_t.astype(compute_dtype)

    if gcn:
        parts = (prep(weight),)
    else:
        parts = (prep(weight[:, :input_size]), prep(weight[:, input_size:]))
    return parts, out_size


_VMEM_TILE_BUDGET = 40 * 1024 * 1024   # conservative buffer budget (v7x: 64 MiB physical)


def _select_tiles(n, k, out_p, n_feat, feat_bytes, out_bytes,
                  tile_m_req, tile_k_req):
    tile_m = 512 if tile_m_req is None else int(tile_m_req)
    if n <= tile_m:
        tile_m = n                                   # block == full row dim
    else:
        tile_m = max(16, (tile_m // 16) * 16)        # 16-row multiple (bf16 out)

    def est(tm, tk, k_tiled):
        feat = n_feat * 2 * tm * tk * feat_bytes          # double-buffered row tiles
        w = n_feat * (2 if k_tiled else 1) * tk * out_p * 2
        out = 2 * tm * out_p * out_bytes
        acc = tm * out_p * 4 if k_tiled else 0
        return feat + w + out + acc

    if tile_k_req is not None:
        tk = min(k, max(128, (int(tile_k_req) // 128) * 128))
        k_tiled = tk < k
        return tile_m, tk, k_tiled, est(tile_m, tk, k_tiled)

    if k <= 128 or est(tile_m, k, False) <= _VMEM_TILE_BUDGET:
        return tile_m, k, False, est(tile_m, k, False)

    tk = max(128, (min(k, 2048) // 128) * 128)
    while tk > 128 and est(tile_m, tk, True) > _VMEM_TILE_BUDGET:
        tk = max(128, ((tk // 2) // 128) * 128)
    while tile_m > 16 and est(tile_m, tk, True) > _VMEM_TILE_BUDGET:
        tile_m = max(16, ((tile_m // 2) // 16) * 16)
    return tile_m, tk, True, est(tile_m, tk, True)


def sage_layer_forward(self_feats, aggregate_feats, weight=None, *, gcn=False,
                       prepared_weights=None, out_size=None,
                       tile_m=None, tile_k=None,
                       compute_dtype=jnp.bfloat16, out_dtype=None,
                       slice_output=True):
    """Pallas implementation of SageLayer.forward.

    Either pass `weight` in the PyTorch layout (out_size, K or 2K), or
    pre-compute `prepared_weights, out_size = prepare_sage_weights(...)` once
    per layer to avoid the per-step transpose/pad/cast pass.  Returns an
    (N, out_size) array in `out_dtype` (default bf16); set slice_output=False
    to keep the 128-lane-padded layout when chaining layers.
    """
    n, input_size = aggregate_feats.shape
    if not gcn:
        assert self_feats is not None and self_feats.shape == (n, input_size)
    if out_dtype is None:
        out_dtype = compute_dtype     # bf16 out -> half the HBM writeback

    if prepared_weights is None:
        assert weight is not None, "need `weight` or `prepared_weights`"
        prepared_weights, out_size = prepare_sage_weights(
            weight, input_size, gcn=gcn, compute_dtype=compute_dtype)
    assert out_size is not None
    w_parts = tuple(prepared_weights)
    feats = (aggregate_feats,) if gcn else (self_feats, aggregate_feats)
    n_feat = len(w_parts)
    k_total = input_size
    out_p = w_parts[0].shape[1]

    feat_bytes = feats[0].dtype.itemsize
    out_bytes = jnp.dtype(out_dtype).itemsize
    tile_m_, tile_k_, k_tiled, vmem_est = _select_tiles(
        n, k_total, out_p, n_feat, feat_bytes, out_bytes, tile_m, tile_k)

    grid_n = pl.cdiv(n, tile_m_)
    out_shape = jax.ShapeDtypeStruct((n, out_p), out_dtype)
    vmem_limit = int(max(32 << 20, min(int(vmem_est * 1.4) + (2 << 20), 96 << 20)))

    cost = pl.CostEstimate(
        flops=2 * n_feat * n * k_total * out_p,
        transcendentals=0,
        bytes_accessed=(n_feat * n * k_total * feat_bytes
                        + n_feat * k_total * out_p * 2
                        + n * out_p * out_bytes),
    )

    def build_and_run(weight_spec_kwargs):
        if not k_tiled:
            grid = (grid_n,)
            x_spec = pl.BlockSpec((tile_m_, k_total), lambda i: (i, 0))
            w_spec = pl.BlockSpec((k_total, out_p), lambda i: (0, 0),
                                  **weight_spec_kwargs)     # resident weights
            o_spec = pl.BlockSpec((tile_m_, out_p), lambda i: (i, 0))
            kernel = functools.partial(_sage_direct_kernel, n_feat=n_feat,
                                       compute_dtype=compute_dtype)
            scratch = []
            dims = ("parallel",)
        else:
            grid = (grid_n, pl.cdiv(k_total, tile_k_))
            x_spec = pl.BlockSpec((tile_m_, tile_k_), lambda i, kk: (i, kk))
            w_spec = pl.BlockSpec((tile_k_, out_p), lambda i, kk: (kk, 0))
            o_spec = pl.BlockSpec((tile_m_, out_p), lambda i, kk: (i, 0))
            kernel = functools.partial(
                _sage_ktiled_kernel, n_feat=n_feat, compute_dtype=compute_dtype,
                k_total=k_total, tile_k=tile_k_,
                mask_k=(k_total % tile_k_ != 0))
            scratch = [pltpu.VMEM((tile_m_, out_p), jnp.float32)]
            dims = ("parallel", "arbitrary")

        return pl.pallas_call(
            kernel,
            out_shape=out_shape,
            grid=grid,
            in_specs=[x_spec] * n_feat + [w_spec] * n_feat,
            out_specs=o_spec,
            scratch_shapes=scratch,
            compiler_params=pltpu.CompilerParams(
                dimension_semantics=dims,
                vmem_limit_bytes=vmem_limit),
            cost_estimate=cost,
        )(*feats, *w_parts)

    if not k_tiled:
        # Constant weight blocks: single-buffer them to save VMEM (helps most on
        # v7x's 64 MiB).  Fall back to default double-buffering if this jax
        # build does not accept pipeline_mode on a pallas_call BlockSpec.
        try:
            out = build_and_run({"pipeline_mode": pl.Buffered(1)})
        except Exception:
            out = build_and_run({})
    else:
        out = build_and_run({})

    if slice_output and out_p != out_size:
        out = out[:, :out_size]    # bf16 -> half-size copy; skip via slice_output=False
    return out


# ------------------------------ demo / check -------------------------------- #

def xavier_uniform(key, shape):
    """Deterministic xavier_uniform_ matching torch's fan computation for 2-D."""
    fan_out, fan_in = shape
    bound = math.sqrt(6.0 / (fan_in + fan_out))
    return jax.random.uniform(key, shape, jnp.float32, -bound, bound)


def _reference(self_feats, aggregate_feats, weight, gcn, compute_dtype, out_dtype):
    combined = aggregate_feats if gcn else jnp.concatenate(
        [self_feats, aggregate_feats], axis=1)
    c = combined.astype(compute_dtype).astype(jnp.float32)
    w = weight.astype(compute_dtype).astype(jnp.float32)
    out = jnp.maximum(jnp.dot(c, w.T, precision=jax.lax.Precision.HIGHEST), 0.0)
    return out.astype(out_dtype)


if __name__ == "__main__":
    root = jax.random.PRNGKey(0)

    def run_case(n, input_size, out_size, gcn, tile_k=None, seed_offset=0):
        keys = jax.random.split(jax.random.fold_in(root, seed_offset), 3)
        feat_dim = input_size if gcn else 2 * input_size
        weight = xavier_uniform(keys[0], (out_size, feat_dim))
        self_feats = jax.random.normal(keys[1], (n, input_size), jnp.float32)
        agg_feats = jax.random.normal(keys[2], (n, input_size), jnp.float32)

        # One-time weight prep (hoisted out of the forward pass).
        prepared, osz = prepare_sage_weights(weight, input_size, gcn=gcn)
        out = sage_layer_forward(None if gcn else self_feats, agg_feats,
                                 gcn=gcn, prepared_weights=prepared,
                                 out_size=osz, tile_k=tile_k)
        out = jax.block_until_ready(out)
        assert out.shape == (n, out_size), out.shape

        ref = _reference(self_feats, agg_feats, weight, gcn,
                         jnp.bfloat16, out.dtype).astype(jnp.float32)
        got = out.astype(jnp.float32)
        err = float(jnp.max(jnp.abs(got - ref)))
        scale = float(jnp.max(jnp.abs(ref))) + 1e-6
        assert err <= 2e-2 * scale + 2e-2, (err, scale)

    # Small shapes consistent with the module (batch of 8 nodes, hidden 32).
    run_case(8, 32, 32, gcn=False, seed_offset=0)
    # Exercise the K-tiled accumulator path (ragged K block + lane-padded out).
    run_case(32, 160, 48, gcn=False, tile_k=128, seed_offset=1)
    # GCN variant (no concat).
    run_case(8, 32, 32, gcn=True, seed_offset=2)

    print("KERNEL_OK")
</pallas_src>

<mosaic_0001>
module attributes {stable_mosaic.version = 11 : i64} {
  func.func @_sage_direct_kernel(%arg0: i32, %arg1: memref<8x32xf32, #tpu.memory_space<vmem>>, %arg2: memref<8x32xf32, #tpu.memory_space<vmem>>, %arg3: memref<32x128xbf16, #tpu.memory_space<vmem>>, %arg4: memref<32x128xbf16, #tpu.memory_space<vmem>>, %arg5: memref<8x128xbf16, #tpu.memory_space<vmem>>) attributes {dimension_semantics = [#tpu.dimension_semantics<parallel>], iteration_bounds = array<i64: 1>, scalar_prefetch = 0 : i64, scratch_operands = 0 : i64, tpu.core_type = #tpu.core_type<tc>, window_params = [{transform_indices = @transform_0, window_bounds = array<i64: 8, 32>}, {transform_indices = @transform_1, window_bounds = array<i64: 8, 32>}, {pipeline_mode = #tpu.pipeline_mode<synchronous>, transform_indices = @transform_2, window_bounds = array<i64: 32, 128>}, {pipeline_mode = #tpu.pipeline_mode<synchronous>, transform_indices = @transform_3, window_bounds = array<i64: 32, 128>}, {transform_indices = @transform_4, window_bounds = array<i64: 8, 128>}]} {
    %c0 = arith.constant 0 : index
    %c0_0 = arith.constant 0 : index
    %0 = vector.load %arg1[%c0, %c0_0] : memref<8x32xf32, #tpu.memory_space<vmem>>, vector<8x32xf32>
    %1 = arith.truncf %0 : vector<8x32xf32> to vector<8x32xbf16>
    %c0_1 = arith.constant 0 : index
    %c0_2 = arith.constant 0 : index
    %2 = vector.load %arg3[%c0_1, %c0_2] : memref<32x128xbf16, #tpu.memory_space<vmem>>, vector<32x128xbf16>
    %cst = arith.constant dense<0.000000e+00> : vector<8x128xf32>
    %3 = tpu.matmul %1, %2, %cst {dimension_numbers = #tpu.dot_dimension_numbers<[1], [0], [0], [1], [0, 0, 1, 1], [], []>} : vector<8x32xbf16>, vector<32x128xbf16>, vector<8x128xf32> -> vector<8x128xf32>
    %c0_3 = arith.constant 0 : index
    %c0_4 = arith.constant 0 : index
    %4 = vector.load %arg2[%c0_3, %c0_4] : memref<8x32xf32, #tpu.memory_space<vmem>>, vector<8x32xf32>
    %5 = arith.truncf %4 : vector<8x32xf32> to vector<8x32xbf16>
    %c0_5 = arith.constant 0 : index
    %c0_6 = arith.constant 0 : index
    %6 = vector.load %arg4[%c0_5, %c0_6] : memref<32x128xbf16, #tpu.memory_space<vmem>>, vector<32x128xbf16>
    %cst_7 = arith.constant dense<0.000000e+00> : vector<8x128xf32>
    %7 = tpu.matmul %5, %6, %cst_7 {dimension_numbers = #tpu.dot_dimension_numbers<[1], [0], [0], [1], [0, 0, 1, 1], [], []>} : vector<8x32xbf16>, vector<32x128xbf16>, vector<8x128xf32> -> vector<8x128xf32>
    %8 = arith.addf %3, %7 : vector<8x128xf32>
    %cst_8 = arith.constant 0.000000e+00 : f32
    %9 = vector.broadcast %cst_8 : f32 to vector<8x128xf32>
    %10 = arith.maximumf %8, %9 : vector<8x128xf32>
    %11 = arith.truncf %10 : vector<8x128xf32> to vector<8x128xbf16>
    %c0_9 = arith.constant 0 : index
    %c0_10 = arith.constant 0 : index
    %12 = vector.load %arg5[%c0_9, %c0_10] : memref<8x128xbf16, #tpu.memory_space<vmem>>, vector<8x128xbf16>
    tpu.vector_store %arg5[%c0_9, %c0_10], %11 {strides = array<i32>} : memref<8x128xbf16, #tpu.memory_space<vmem>>, vector<8x128xbf16>,
    return
  }
  func.func @transform_0(%arg0: i32) -> (i32, i32) {
    %c0_i32 = arith.constant 0 : i32
    %c0_i32_0 = arith.constant 0 : i32
    return %arg0, %c0_i32 : i32, i32
  }
  func.func @transform_1(%arg0: i32) -> (i32, i32) {
    %c0_i32 = arith.constant 0 : i32
    %c0_i32_0 = arith.constant 0 : i32
    return %arg0, %c0_i32 : i32, i32
  }
  func.func @transform_2(%arg0: i32) -> (i32, i32) {
    %c0_i32 = arith.constant 0 : i32
    %c0_i32_0 = arith.constant 0 : i32
    %c0_i32_1 = arith.constant 0 : i32
    return %c0_i32, %c0_i32_0 : i32, i32
  }
  func.func @transform_3(%arg0: i32) -> (i32, i32) {
    %c0_i32 = arith.constant 0 : i32
    %c0_i32_0 = arith.constant 0 : i32
    %c0_i32_1 = arith.constant 0 : i32
    return %c0_i32, %c0_i32_0 : i32, i32
  }
  func.func @transform_4(%arg0: i32) -> (i32, i32) {
    %c0_i32 = arith.constant 0 : i32
    %c0_i32_0 = arith.constant 0 : i32
    return %arg0, %c0_i32 : i32, i32
  }
}

module attributes {stable_mosaic.version = 11 : i64} {
  func.func @_sage_direct_kernel(%arg0: i32, %arg1: memref<8x32xf32, #tpu.memory_space<vmem>>, %arg2: memref<8x32xf32, #tpu.memory_space<vmem>>, %arg3: memref<32x128xbf16, #tpu.memory_space<vmem>>, %arg4: memref<32x128xbf16, #tpu.memory_space<vmem>>, %arg5: memref<8x128xbf16, #tpu.memory_space<vmem>>) attributes {dimension_semantics = [#tpu.dimension_semantics<parallel>], iteration_bounds = array<i64: 1>, scalar_prefetch = 0 : i64, scratch_operands = 0 : i64, tpu.core_type = #tpu.core_type<tc>, window_params = [{transform_indices = @transform_0, window_bounds = array<i64: 8, 32>}, {transform_indices = @transform_1, window_bounds = array<i64: 8, 32>}, {pipeline_mode = #tpu.pipeline_mode<synchronous>, transform_indices = @transform_2, window_bounds = array<i64: 32, 128>}, {pipeline_mode = #tpu.pipeline_mode<synchronous>, transform_indices = @transform_3, window_bounds = array<i64: 32, 128>}, {transform_indices = @transform_4, window_bounds = array<i64: 8, 128>}]} {
    %c0 = arith.constant 0 : index
    %c0_0 = arith.constant 0 : index
    %0 = vector.load %arg1[%c0, %c0_0] : memref<8x32xf32, #tpu.memory_space<vmem>>, vector<8x32xf32>
    %1 = arith.truncf %0 : vector<8x32xf32> to vector<8x32xbf16>
    %c0_1 = arith.constant 0 : index
    %c0_2 = arith.constant 0 : index
    %2 = vector.load %arg3[%c0_1, %c0_2] : memref<32x128xbf16, #tpu.memory_space<vmem>>, vector<32x128xbf16>
    %cst = arith.constant dense<0.000000e+00> : vector<8x128xf32>
    %3 = tpu.matmul %1, %2, %cst {dimension_numbers = #tpu.dot_dimension_numbers<[1], [0], [0], [1], [0, 0, 1, 1], [], []>} : vector<8x32xbf16>, vector<32x128xbf16>, vector<8x128xf32> -> vector<8x128xf32>
    %c0_3 = arith.constant 0 : index
    %c0_4 = arith.constant 0 : index
    %4 = vector.load %arg2[%c0_3, %c0_4] : memref<8x32xf32, #tpu.memory_space<vmem>>, vector<8x32xf32>
    %5 = arith.truncf %4 : vector<8x32xf32> to vector<8x32xbf16>
    %c0_5 = arith.constant 0 : index
    %c0_6 = arith.constant 0 : index
    %6 = vector.load %arg4[%c0_5, %c0_6] : memref<32x128xbf16, #tpu.memory_space<vmem>>, vector<32x128xbf16>
    %cst_7 = arith.constant dense<0.000000e+00> : vector<8x128xf32>
    %7 = tpu.matmul %5, %6, %cst_7 {dimension_numbers = #tpu.dot_dimension_numbers<[1], [0], [0], [1], [0, 0, 1, 1], [], []>} : vector<8x32xbf16>, vector<32x128xbf16>, vector<8x128xf32> -> vector<8x128xf32>
    %8 = arith.addf %3, %7 : vector<8x128xf32>
    %cst_8 = arith.constant 0.000000e+00 : f32
    %9 = vector.broadcast %cst_8 : f32 to vector<8x128xf32>
    %10 = arith.maximumf %8, %9 : vector<8x128xf32>
    %11 = arith.truncf %10 : vector<8x128xf32> to vector<8x128xbf16>
    %c0_9 = arith.constant 0 : index
    %c0_10 = arith.constant 0 : index
    %12 = vector.load %arg5[%c0_9, %c0_10] : memref<8x128xbf16, #tpu.memory_space<vmem>>, vector<8x128xbf16>
    tpu.vector_store %arg5[%c0_9, %c0_10], %11 {strides = array<i32>} : memref<8x128xbf16, #tpu.memory_space<vmem>>, vector<8x128xbf16>,
    return
  }
  func.func @transform_0(%arg0: i32) -> (i32, i32) {
    %c0_i32 = arith.constant 0 : i32
    %c0_i32_0 = arith.constant 0 : i32
    return %arg0, %c0_i32 : i32, i32
  }
  func.func @transform_1(%arg0: i32) -> (i32, i32) {
    %c0_i32 = arith.constant 0 : i32
    %c0_i32_0 = arith.constant 0 : i32
    return %arg0, %c0_i32 : i32, i32
  }
  func.func @transform_2(%arg0: i32) -> (i32, i32) {
    %c0_i32 = arith.constant 0 : i32
    %c0_i32_0 = arith.constant 0 : i32
    %c0_i32_1 = arith.constant 0 : i32
    return %c0_i32, %c0_i32_0 : i32, i32
  }
  func.func @transform_3(%arg0: i32) -> (i32, i32) {
    %c0_i32 = arith.constant 0 : i32
    %c0_i32_0 = arith.constant 0 : i32
    %c0_i32_1 = arith.constant 0 : i32
    return %c0_i32, %c0_i32_0 : i32, i32
  }
  func.func @transform_4(%arg0: i32) -> (i32, i32) {
    %c0_i32 = arith.constant 0 : i32
    %c0_i32_0 = arith.constant 0 : i32
    return %arg0, %c0_i32 : i32, i32
  }
}

</mosaic_0001>

<llo_original>
// kernel: tpu_custom_call.1
$region0: #{tpu_custom_call.1}
  #allocation0 [shape = 'u32[]', space=smem, size = 0x4, offset = 0x4, fixed_abs, tag = 'smem constant byte address 0x4 - core index']
  #allocation1 [shape = 'u32[144,128]{1,0:T(1,128)}', space=vmem, size = 0x12000, scoped, tag = 'internal scratch']
  %s0 = inlined_call_operand.hbm [shape: f32[8,32], index: 0, kind: input, shape index: {}]
  %s1 = inlined_call_operand.hbm [shape: f32[8,32], index: 1, kind: input, shape index: {}]
  %s2 = inlined_call_operand.hbm [shape: bf16[32,128], index: 2, kind: input, shape index: {}]
  %s3 = inlined_call_operand.hbm [shape: bf16[32,128], index: 3, kind: input, shape index: {}]
  %s4 = inlined_call_operand.hbm [shape: bf16[8,128], index: 4, kind: output, shape index: {}]
  %s5 = sld [smem:[#allocation0]]
  $region42: #{tpu_custom_call.1} parent=0
    _
  %s7 = ssub.s32 1, %s5
  %s8 = scalar_select 0, %s7, %s5
  $region1: #{tpu_custom_call.1} parent=0
    #allocation2 [shape = 'u8[4096]{0}', space=vmem, size = 0x1000, scoped, tag = 'input window, operand 0, single buffered']
    #allocation3 [shape = 's32[1]{0}', space=sflag, size = 0x4, scoped, tag = 'scoped memory for tpu_custom_call.1']
    #allocation4 [shape = 's32[1]{0}', space=sflag, size = 0x4, scoped, tag = 'scoped memory for tpu_custom_call.1']
    #allocation5 [shape = 'u8[4096]{0}', space=vmem, size = 0x1000, scoped, tag = 'input window, operand 1, single buffered']
    #allocation6 [shape = 's32[1]{0}', space=sflag, size = 0x4, scoped, tag = 'scoped memory for tpu_custom_call.1']
    #allocation7 [shape = 'u8[8192]{0}', space=vmem, size = 0x2000, scoped, tag = 'input window, operand 2, single buffered']
    #allocation8 [shape = 'u8[8192]{0}', space=vmem, size = 0x2000, scoped, tag = 'input window, operand 3, single buffered']
    #allocation9 [shape = 's32[1]{0}', space=sflag, size = 0x4, scoped, tag = 'scoped memory for tpu_custom_call.1']
    #allocation10 [shape = 'u8[2048]{0}', space=vmem, size = 0x800, scoped, tag = 'output window, operand 0, single buffered']
    %9 = vsyncpa [#allocation3], 0
    %10 = vsyncpa [#allocation6], 0
    %11 = vsyncpa [#allocation9], 0
    %12 = vsyncpa [#allocation4], 0
    // Predicated region
    $region2: #{tpu_custom_call.1} parent=1 // pred_check
      _
    $region3: #{tpu_custom_call.1} parent=1 // pred_check_branch
      %14 = sbr.rel (0) target = $region5
    $region4: #{tpu_custom_call.1} parent=1 // pred_region
      %s16 = ssub.s32 128, 128
      %17 = vsyncadd [#allocation3], %s16
      %s19 = sshll.u32 [#allocation2], 4
      %s20 = int_to_ptr.vmem [resolvable:$true] %s19
      %22 = dma.hbm_to_vmem [thread:$0]  %s0, 128, %s20, [#allocation3]
    $region5: #{tpu_custom_call.1} parent=1 // pred_fallthru
      _
    // Predicated region
    $region6: #{tpu_custom_call.1} parent=1 // pred_check
      _
    $region7: #{tpu_custom_call.1} parent=1 // pred_check_branch
      %24 = sbr.rel (0) target = $region9
    $region8: #{tpu_custom_call.1} parent=1 // pred_region
      %s26 = ssub.s32 128, 128
      %27 = vsyncadd [#allocation6], %s26
      %s29 = sshll.u32 [#allocation5], 4
      %s30 = int_to_ptr.vmem [resolvable:$true] %s29
      %32 = dma.hbm_to_vmem [thread:$0]  %s1, 128, %s30, [#allocation6]
    $region9: #{tpu_custom_call.1} parent=1 // pred_fallthru
      _
    // Predicated region
    $region10: #{tpu_custom_call.1} parent=1 // pred_check
      _
    $region11: #{tpu_custom_call.1} parent=1 // pred_check_branch
      %34 = sbr.rel (0) target = $region13
    $region12: #{tpu_custom_call.1} parent=1 // pred_region
      %s36 = ssub.s32 256, 256
      %37 = vsyncadd [#allocation6], %s36
      %s38 = sshll.u32 [#allocation7], 4
      %s39 = int_to_ptr.vmem [resolvable:$true] %s38
      %44 = dma.hbm_to_vmem [thread:$0]  %s2, 256, %s39, [#allocation6], 64, 64, 4
    $region13: #{tpu_custom_call.1} parent=1 // pred_fallthru
      _
    // Predicated region
    $region14: #{tpu_custom_call.1} parent=1 // pred_check
      _
    $region15: #{tpu_custom_call.1} parent=1 // pred_check_branch
      %46 = sbr.rel (0) target = $region17
    $region16: #{tpu_custom_call.1} parent=1 // pred_region
      %s48 = ssub.s32 256, 256
      %49 = vsyncadd [#allocation9], %s48
      %s50 = sshll.u32 [#allocation8], 4
      %s51 = int_to_ptr.vmem [resolvable:$true] %s50
      %56 = dma.hbm_to_vmem [thread:$0]  %s3, 256, %s51, [#allocation9], 64, 64, 4
    $region17: #{tpu_custom_call.1} parent=1 // pred_fallthru
      _
    // Predicated region
    $region18: #{tpu_custom_call.1} parent=1 // pred_check
      _
    $region19: #{tpu_custom_call.1} parent=1 // pred_check_branch
      %58 = sbr.rel (0) target = $region21
    $region20: #{tpu_custom_call.1} parent=1 // pred_region
      %59 = dma.done [#allocation3], 128
    $region21: #{tpu_custom_call.1} parent=1 // pred_fallthru
      _
    // Predicated region
    $region22: #{tpu_custom_call.1} parent=1 // pred_check
      _
    $region23: #{tpu_custom_call.1} parent=1 // pred_check_branch
      %61 = sbr.rel (0) target = $region25
    $region24: #{tpu_custom_call.1} parent=1 // pred_region
      %62 = dma.done [#allocation6], 128
    $region25: #{tpu_custom_call.1} parent=1 // pred_fallthru
      _
    // Predicated region
    $region26: #{tpu_custom_call.1} parent=1 // pred_check
      _
    $region27: #{tpu_custom_call.1} parent=1 // pred_check_branch
      %64 = sbr.rel (0) target = $region29
    $region28: #{tpu_custom_call.1} parent=1 // pred_region
      %65 = dma.done [#allocation6], 256
    $region29: #{tpu_custom_call.1} parent=1 // pred_fallthru
      _
    // Predicated region
    $region30: #{tpu_custom_call.1} parent=1 // pred_check
      _
    $region31: #{tpu_custom_call.1} parent=1 // pred_check_branch
      %67 = sbr.rel (0) target = $region33
    $region32: #{tpu_custom_call.1} parent=1 // pred_region
      %68 = dma.done [#allocation9], 256
    $region33: #{tpu_custom_call.1} parent=1 // pred_fallthru
      _
    %v70 = vld [vmem:[#allocation2] sm:$0xff]
    %v71 = vpack.c.bf16 %v70, %v70
    %v72 = vld [vmem:[#allocation7] sm:$0xf]
    %v73 = vld [vmem:[#allocation7 + $0x4] sm:$0xf]
    %v74 = vld [vmem:[#allocation7 + $0x8] sm:$0xf]
    %v75 = vld [vmem:[#allocation7 + $0xc] sm:$0xf]
    %v76 = vld [vmem:[#allocation5] sm:$0xff]
    %v77 = vpack.c.bf16 %v76, %v76
    %v78 = vld [vmem:[#allocation8] sm:$0xf]
    %v79 = vld [vmem:[#allocation8 + $0x4] sm:$0xf]
    %v80 = vld [vmem:[#allocation8 + $0x8] sm:$0xf]
    %v81 = vld [vmem:[#allocation8 + $0xc] sm:$0xf]
    %v86 = vunpack.c.l.b16 %v78
    %v87 = vunpack.c.l.b16 %v79
    %v88 = vunpack.c.l.b16 %v80
    %v89 = vunpack.c.l.b16 %v81
    %v90 = vpack.c.b16 %v87, %v86
    %v91 = vpack.c.b16 %v89, %v88
    %vm94 = vcmask 261120
    %v96 = vsel %vm94, %v77, 0
    %98 = vmatprep.subr.bf16.mxu0 0
    %99 = vmatpush1.bf16.msra.mxu0 %v90
    %100 = vmatprep.subr.bf16.mxu0 0
    %101 = vmatpush1.bf16.msra.mxu0 %v91
    %102 = vmatprep.subr.bf16.mxu0 0
    %103 = vmatpush1.bf16.msra.mxu0 0
    %104 = vmatprep.subr.bf16.mxu0 0
    %105 = vmatpush1.bf16.msra.mxu0 0
    %106 = vmatprep.subr.bf16.mxu0 0
    %107 = vmatpush1.bf16.msra.mxu0 0
    %108 = vmatprep.subr.bf16.mxu0 0
    %109 = vmatpush1.bf16.msra.mxu0 0
    %110 = vmatprep.subr.bf16.mxu0 0
    %111 = vmatpush1.bf16.msra.mxu0 0
    %112 = vmatprep.subr.bf16.mxu0 0
    %113 = vmatpush1.bf16.msra.mxu0 0
    %114 = vmatprep.subr.bf16.mxu0 0
    %115 = vmatpush1.bf16.msra.mxu0 0
    %116 = vmatprep.subr.bf16.mxu0 0
    %117 = vmatpush1.bf16.msra.mxu0 0
    %118 = vmatprep.subr.bf16.mxu0 0
    %119 = vmatpush1.bf16.msra.mxu0 0
    %120 = vmatprep.subr.bf16.mxu0 0
    %121 = vmatpush1.bf16.msra.mxu0 0
    %122 = vmatprep.subr.bf16.mxu0 0
    %123 = vmatpush1.bf16.msra.mxu0 0
    %124 = vmatprep.subr.bf16.mxu0 0
    %125 = vmatpush1.bf16.msra.mxu0 0
    %126 = vmatprep.subr.bf16.mxu0 0
    %127 = vmatpush1.bf16.msra.mxu0 0
    %128 = vmatprep.subr.bf16.mxu0 0
    %129 = vmatpush1.bf16.msra.mxu0 0
    %130 = vmatprep.mubr.bf16.mxu0 0
    %131 = vmatmul.mubr.bf16.gmra.mrb[0].mxu0 %v96
    %v132 = vpop.f32.mrb[0].mxu0
    %v133 = vadd.f32 0.0, %v132
    %v134 = vpop.f32.mrb[0].mxu0
    %v135 = vpop.f32.mrb[0].mxu0
    %v136 = vpop.f32.mrb[0].mxu0
    %137 = vdwg.mxu0
    %v142 = vunpack.c.l.b16 %v72
    %v143 = vunpack.c.l.b16 %v73
    %v144 = vunpack.c.l.b16 %v74
    %v145 = vunpack.c.l.b16 %v75
    %v146 = vpack.c.b16 %v143, %v142
    %v147 = vpack.c.b16 %v145, %v144
    %v151 = vsel %vm94, %v71, 0
    %153 = vmatprep.subr.bf16.mxu0 0
    %154 = vmatpush1.bf16.msra.mxu0 %v146
    %155 = vmatprep.subr.bf16.mxu0 0
    %156 = vmatpush1.bf16.msra.mxu0 %v147
    %157 = vmatprep.subr.bf16.mxu0 0
    %158 = vmatpush1.bf16.msra.mxu0 0
    %159 = vmatprep.subr.bf16.mxu0 0
    %160 = vmatpush1.bf16.msra.mxu0 0
    %161 = vmatprep.subr.bf16.mxu0 0
    %162 = vmatpush1.bf16.msra.mxu0 0
    %163 = vmatprep.subr.bf16.mxu0 0
    %164 = vmatpush1.bf16.msra.mxu0 0
    %165 = vmatprep.subr.bf16.mxu0 0
    %166 = vmatpush1.bf16.msra.mxu0 0
    %167 = vmatprep.subr.bf16.mxu0 0
    %168 = vmatpush1.bf16.msra.mxu0 0
    %169 = vmatprep.subr.bf16.mxu0 0
    %170 = vmatpush1.bf16.msra.mxu0 0
    %171 = vmatprep.subr.bf16.mxu0 0
    %172 = vmatpush1.bf16.msra.mxu0 0
    %173 = vmatprep.subr.bf16.mxu0 0
    %174 = vmatpush1.bf16.msra.mxu0 0
    %175 = vmatprep.subr.bf16.mxu0 0
    %176 = vmatpush1.bf16.msra.mxu0 0
    %177 = vmatprep.subr.bf16.mxu0 0
    %178 = vmatpush1.bf16.msra.mxu0 0
    %179 = vmatprep.subr.bf16.mxu0 0
    %180 = vmatpush1.bf16.msra.mxu0 0
    %181 = vmatprep.subr.bf16.mxu0 0
    %182 = vmatpush1.bf16.msra.mxu0 0
    %183 = vmatprep.subr.bf16.mxu0 0
    %184 = vmatpush1.bf16.msra.mxu0 0
    %185 = vmatprep.mubr.bf16.mxu0 0
    %186 = vmatmul.mubr.bf16.gmra.mrb[0].mxu0 %v151
    %v187 = vpop.f32.mrb[0].mxu0
    %v188 = vadd.f32 %v133, %v187
    %v189 = vpop.f32.mrb[0].mxu0
    %v190 = vpop.f32.mrb[0].mxu0
    %v191 = vpop.f32.mrb[0].mxu0
    %192 = vdwg.mxu0
    %v193 = vmax.f32 %v188, 0.0
    %v194 = vpack.c.bf16 %v193, %v193
    %195 = vst [vmem:[#allocation10] sm:$0xf] %v194
    // Predicated region
    $region34: #{tpu_custom_call.1} parent=1 // pred_check
      _
    $region35: #{tpu_custom_call.1} parent=1 // pred_check_branch
      %197 = sbr.rel (0) target = $region37
    $region36: #{tpu_custom_call.1} parent=1 // pred_region
      %s199 = ssub.s32 64, 64
      %200 = vsyncadd [#allocation4], %s199
      %s202 = sshll.u32 [#allocation10], 4
      %s203 = int_to_ptr.vmem [resolvable:$true] %s202
      %205 = dma.vmem_to_hbm [thread:$0]  %s203, 64, %s4, [#allocation4]
    $region37: #{tpu_custom_call.1} parent=1 // pred_fallthru
      _
    // Predicated region
    $region38: #{tpu_custom_call.1} parent=1 // pred_check
      _
    $region39: #{tpu_custom_call.1} parent=1 // pred_check_branch
      %207 = sbr.rel (0) target = $region41
    $region40: #{tpu_custom_call.1} parent=1 // pred_region
      %208 = dma.done [#allocation4], 64
    $region41: #{tpu_custom_call.1} parent=1 // pred_fallthru
      _
    %209 = vsyncpa [#allocation3], 1
    %210 = vsyncpa [#allocation6], 1
    %211 = vsyncpa [#allocation9], 1
    %212 = vsyncpa [#allocation4], 1

// kernel: tpu_custom_call.1
$region0: #{tpu_custom_call.1}
  #allocation0 [shape = 'u32[]', space=smem, size = 0x4, offset = 0x4, fixed_abs, tag = 'smem constant byte address 0x4 - core index']
  #allocation1 [shape = 'u32[144,128]{1,0:T(1,128)}', space=vmem, size = 0x12000, scoped, tag = 'internal scratch']
  %s0 = inlined_call_operand.hbm [shape: f32[8,32], index: 0, kind: input, shape index: {}]
  %s1 = inlined_call_operand.hbm [shape: f32[8,32], index: 1, kind: input, shape index: {}]
  %s2 = inlined_call_operand.hbm [shape: bf16[32,128], index: 2, kind: input, shape index: {}]
  %s3 = inlined_call_operand.hbm [shape: bf16[32,128], index: 3, kind: input, shape index: {}]
  %s4 = inlined_call_operand.hbm [shape: bf16[8,128], index: 4, kind: output, shape index: {}]
  %s5 = sld [smem:[#allocation0]]
  $region42: #{tpu_custom_call.1} parent=0
    _
  %s7 = ssub.s32 1, %s5
  %s8 = scalar_select 0, %s7, %s5
  $region1: #{tpu_custom_call.1} parent=0
    #allocation2 [shape = 'u8[4096]{0}', space=vmem, size = 0x1000, scoped, tag = 'input window, operand 0, single buffered']
    #allocation3 [shape = 's32[1]{0}', space=sflag, size = 0x4, scoped, tag = 'scoped memory for tpu_custom_call.1']
    #allocation4 [shape = 's32[1]{0}', space=sflag, size = 0x4, scoped, tag = 'scoped memory for tpu_custom_call.1']
    #allocation5 [shape = 'u8[4096]{0}', space=vmem, size = 0x1000, scoped, tag = 'input window, operand 1, single buffered']
    #allocation6 [shape = 's32[1]{0}', space=sflag, size = 0x4, scoped, tag = 'scoped memory for tpu_custom_call.1']
    #allocation7 [shape = 'u8[8192]{0}', space=vmem, size = 0x2000, scoped, tag = 'input window, operand 2, single buffered']
    #allocation8 [shape = 'u8[8192]{0}', space=vmem, size = 0x2000, scoped, tag = 'input window, operand 3, single buffered']
    #allocation9 [shape = 's32[1]{0}', space=sflag, size = 0x4, scoped, tag = 'scoped memory for tpu_custom_call.1']
    #allocation10 [shape = 'u8[2048]{0}', space=vmem, size = 0x800, scoped, tag = 'output window, operand 0, single buffered']
    %9 = vsyncpa [#allocation3], 0
    %10 = vsyncpa [#allocation6], 0
    %11 = vsyncpa [#allocation9], 0
    %12 = vsyncpa [#allocation4], 0
    // Predicated region
    $region2: #{tpu_custom_call.1} parent=1 // pred_check
      _
    $region3: #{tpu_custom_call.1} parent=1 // pred_check_branch
      %14 = sbr.rel (0) target = $region5
    $region4: #{tpu_custom_call.1} parent=1 // pred_region
      %s16 = ssub.s32 128, 128
      %17 = vsyncadd [#allocation3], %s16
      %s19 = sshll.u32 [#allocation2], 4
      %s20 = int_to_ptr.vmem [resolvable:$true] %s19
      %22 = dma.hbm_to_vmem [thread:$0]  %s0, 128, %s20, [#allocation3]
    $region5: #{tpu_custom_call.1} parent=1 // pred_fallthru
      _
    // Predicated region
    $region6: #{tpu_custom_call.1} parent=1 // pred_check
      _
    $region7: #{tpu_custom_call.1} parent=1 // pred_check_branch
      %24 = sbr.rel (0) target = $region9
    $region8: #{tpu_custom_call.1} parent=1 // pred_region
      %s26 = ssub.s32 128, 128
      %27 = vsyncadd [#allocation6], %s26
      %s29 = sshll.u32 [#allocation5], 4
      %s30 = int_to_ptr.vmem [resolvable:$true] %s29
      %32 = dma.hbm_to_vmem [thread:$0]  %s1, 128, %s30, [#allocation6]
    $region9: #{tpu_custom_call.1} parent=1 // pred_fallthru
      _
    // Predicated region
    $region10: #{tpu_custom_call.1} parent=1 // pred_check
      _
    $region11: #{tpu_custom_call.1} parent=1 // pred_check_branch
      %34 = sbr.rel (0) target = $region13
    $region12: #{tpu_custom_call.1} parent=1 // pred_region
      %s36 = ssub.s32 256, 256
      %37 = vsyncadd [#allocation6], %s36
      %s38 = sshll.u32 [#allocation7], 4
      %s39 = int_to_ptr.vmem [resolvable:$true] %s38
      %44 = dma.hbm_to_vmem [thread:$0]  %s2, 256, %s39, [#allocation6], 64, 64, 4
    $region13: #{tpu_custom_call.1} parent=1 // pred_fallthru
      _
    // Predicated region
    $region14: #{tpu_custom_call.1} parent=1 // pred_check
      _
    $region15: #{tpu_custom_call.1} parent=1 // pred_check_branch
      %46 = sbr.rel (0) target = $region17
    $region16: #{tpu_custom_call.1} parent=1 // pred_region
      %s48 = ssub.s32 256, 256
      %49 = vsyncadd [#allocation9], %s48
      %s50 = sshll.u32 [#allocation8], 4
      %s51 = int_to_ptr.vmem [resolvable:$true] %s50
      %56 = dma.hbm_to_vmem [thread:$0]  %s3, 256, %s51, [#allocation9], 64, 64, 4
    $region17: #{tpu_custom_call.1} parent=1 // pred_fallthru
      _
    // Predicated region
    $region18: #{tpu_custom_call.1} parent=1 // pred_check
      _
    $region19: #{tpu_custom_call.1} parent=1 // pred_check_branch
      %58 = sbr.rel (0) target = $region21
    $region20: #{tpu_custom_call.1} parent=1 // pred_region
      %59 = dma.done [#allocation3], 128
    $region21: #{tpu_custom_call.1} parent=1 // pred_fallthru
      _
    // Predicated region
    $region22: #{tpu_custom_call.1} parent=1 // pred_check
      _
    $region23: #{tpu_custom_call.1} parent=1 // pred_check_branch
      %61 = sbr.rel (0) target = $region25
    $region24: #{tpu_custom_call.1} parent=1 // pred_region
      %62 = dma.done [#allocation6], 128
    $region25: #{tpu_custom_call.1} parent=1 // pred_fallthru
      _
    // Predicated region
    $region26: #{tpu_custom_call.1} parent=1 // pred_check
      _
    $region27: #{tpu_custom_call.1} parent=1 // pred_check_branch
      %64 = sbr.rel (0) target = $region29
    $region28: #{tpu_custom_call.1} parent=1 // pred_region
      %65 = dma.done [#allocation6], 256
    $region29: #{tpu_custom_call.1} parent=1 // pred_fallthru
      _
    // Predicated region
    $region30: #{tpu_custom_call.1} parent=1 // pred_check
      _
    $region31: #{tpu_custom_call.1} parent=1 // pred_check_branch
      %67 = sbr.rel (0) target = $region33
    $region32: #{tpu_custom_call.1} parent=1 // pred_region
      %68 = dma.done [#allocation9], 256
    $region33: #{tpu_custom_call.1} parent=1 // pred_fallthru
      _
    %v70 = vld [vmem:[#allocation2] sm:$0xff]
    %v71 = vpack.c.bf16 %v70, %v70
    %v72 = vld [vmem:[#allocation7] sm:$0xf]
    %v73 = vld [vmem:[#allocation7 + $0x4] sm:$0xf]
    %v74 = vld [vmem:[#allocation7 + $0x8] sm:$0xf]
    %v75 = vld [vmem:[#allocation7 + $0xc] sm:$0xf]
    %v76 = vld [vmem:[#allocation5] sm:$0xff]
    %v77 = vpack.c.bf16 %v76, %v76
    %v78 = vld [vmem:[#allocation8] sm:$0xf]
    %v79 = vld [vmem:[#allocation8 + $0x4] sm:$0xf]
    %v80 = vld [vmem:[#allocation8 + $0x8] sm:$0xf]
    %v81 = vld [vmem:[#allocation8 + $0xc] sm:$0xf]
    %v86 = vunpack.c.l.b16 %v78
    %v87 = vunpack.c.l.b16 %v79
    %v88 = vunpack.c.l.b16 %v80
    %v89 = vunpack.c.l.b16 %v81
    %v90 = vpack.c.b16 %v87, %v86
    %v91 = vpack.c.b16 %v89, %v88
    %vm94 = vcmask 261120
    %v96 = vsel %vm94, %v77, 0
    %98 = vmatprep.subr.bf16.mxu0 0
    %99 = vmatpush1.bf16.msra.mxu0 %v90
    %100 = vmatprep.subr.bf16.mxu0 0
    %101 = vmatpush1.bf16.msra.mxu0 %v91
    %102 = vmatprep.subr.bf16.mxu0 0
    %103 = vmatpush1.bf16.msra.mxu0 0
    %104 = vmatprep.subr.bf16.mxu0 0
    %105 = vmatpush1.bf16.msra.mxu0 0
    %106 = vmatprep.subr.bf16.mxu0 0
    %107 = vmatpush1.bf16.msra.mxu0 0
    %108 = vmatprep.subr.bf16.mxu0 0
    %109 = vmatpush1.bf16.msra.mxu0 0
    %110 = vmatprep.subr.bf16.mxu0 0
    %111 = vmatpush1.bf16.msra.mxu0 0
    %112 = vmatprep.subr.bf16.mxu0 0
    %113 = vmatpush1.bf16.msra.mxu0 0
    %114 = vmatprep.subr.bf16.mxu0 0
    %115 = vmatpush1.bf16.msra.mxu0 0
    %116 = vmatprep.subr.bf16.mxu0 0
    %117 = vmatpush1.bf16.msra.mxu0 0
    %118 = vmatprep.subr.bf16.mxu0 0
    %119 = vmatpush1.bf16.msra.mxu0 0
    %120 = vmatprep.subr.bf16.mxu0 0
    %121 = vmatpush1.bf16.msra.mxu0 0
    %122 = vmatprep.subr.bf16.mxu0 0
    %123 = vmatpush1.bf16.msra.mxu0 0
    %124 = vmatprep.subr.bf16.mxu0 0
    %125 = vmatpush1.bf16.msra.mxu0 0
    %126 = vmatprep.subr.bf16.mxu0 0
    %127 = vmatpush1.bf16.msra.mxu0 0
    %128 = vmatprep.subr.bf16.mxu0 0
    %129 = vmatpush1.bf16.msra.mxu0 0
    %130 = vmatprep.mubr.bf16.mxu0 0
    %131 = vmatmul.mubr.bf16.gmra.mrb[0].mxu0 %v96
    %v132 = vpop.f32.mrb[0].mxu0
    %v133 = vadd.f32 0.0, %v132
    %v134 = vpop.f32.mrb[0].mxu0
    %v135 = vpop.f32.mrb[0].mxu0
    %v136 = vpop.f32.mrb[0].mxu0
    %137 = vdwg.mxu0
    %v142 = vunpack.c.l.b16 %v72
    %v143 = vunpack.c.l.b16 %v73
    %v144 = vunpack.c.l.b16 %v74
    %v145 = vunpack.c.l.b16 %v75
    %v146 = vpack.c.b16 %v143, %v142
    %v147 = vpack.c.b16 %v145, %v144
    %v151 = vsel %vm94, %v71, 0
    %153 = vmatprep.subr.bf16.mxu0 0
    %154 = vmatpush1.bf16.msra.mxu0 %v146
    %155 = vmatprep.subr.bf16.mxu0 0
    %156 = vmatpush1.bf16.msra.mxu0 %v147
    %157 = vmatprep.subr.bf16.mxu0 0
    %158 = vmatpush1.bf16.msra.mxu0 0
    %159 = vmatprep.subr.bf16.mxu0 0
    %160 = vmatpush1.bf16.msra.mxu0 0
    %161 = vmatprep.subr.bf16.mxu0 0
    %162 = vmatpush1.bf16.msra.mxu0 0
    %163 = vmatprep.subr.bf16.mxu0 0
    %164 = vmatpush1.bf16.msra.mxu0 0
    %165 = vmatprep.subr.bf16.mxu0 0
    %166 = vmatpush1.bf16.msra.mxu0 0
    %167 = vmatprep.subr.bf16.mxu0 0
    %168 = vmatpush1.bf16.msra.mxu0 0
    %169 = vmatprep.subr.bf16.mxu0 0
    %170 = vmatpush1.bf16.msra.mxu0 0
    %171 = vmatprep.subr.bf16.mxu0 0
    %172 = vmatpush1.bf16.msra.mxu0 0
    %173 = vmatprep.subr.bf16.mxu0 0
    %174 = vmatpush1.bf16.msra.mxu0 0
    %175 = vmatprep.subr.bf16.mxu0 0
    %176 = vmatpush1.bf16.msra.mxu0 0
    %177 = vmatprep.subr.bf16.mxu0 0
    %178 = vmatpush1.bf16.msra.mxu0 0
    %179 = vmatprep.subr.bf16.mxu0 0
    %180 = vmatpush1.bf16.msra.mxu0 0
    %181 = vmatprep.subr.bf16.mxu0 0
    %182 = vmatpush1.bf16.msra.mxu0 0
    %183 = vmatprep.subr.bf16.mxu0 0
    %184 = vmatpush1.bf16.msra.mxu0 0
    %185 = vmatprep.mubr.bf16.mxu0 0
    %186 = vmatmul.mubr.bf16.gmra.mrb[0].mxu0 %v151
    %v187 = vpop.f32.mrb[0].mxu0
    %v188 = vadd.f32 %v133, %v187
    %v189 = vpop.f32.mrb[0].mxu0
    %v190 = vpop.f32.mrb[0].mxu0
    %v191 = vpop.f32.mrb[0].mxu0
    %192 = vdwg.mxu0
    %v193 = vmax.f32 %v188, 0.0
    %v194 = vpack.c.bf16 %v193, %v193
    %195 = vst [vmem:[#allocation10] sm:$0xf] %v194
    // Predicated region
    $region34: #{tpu_custom_call.1} parent=1 // pred_check
      _
    $region35: #{tpu_custom_call.1} parent=1 // pred_check_branch
      %197 = sbr.rel (0) target = $region37
    $region36: #{tpu_custom_call.1} parent=1 // pred_region
      %s199 = ssub.s32 64, 64
      %200 = vsyncadd [#allocation4], %s199
      %s202 = sshll.u32 [#allocation10], 4
      %s203 = int_to_ptr.vmem [resolvable:$true] %s202
      %205 = dma.vmem_to_hbm [thread:$0]  %s203, 64, %s4, [#allocation4]
    $region37: #{tpu_custom_call.1} parent=1 // pred_fallthru
      _
    // Predicated region
    $region38: #{tpu_custom_call.1} parent=1 // pred_check
      _
    $region39: #{tpu_custom_call.1} parent=1 // pred_check_branch
      %207 = sbr.rel (0) target = $region41
    $region40: #{tpu_custom_call.1} parent=1 // pred_region
      %208 = dma.done [#allocation4], 64
    $region41: #{tpu_custom_call.1} parent=1 // pred_fallthru
      _
    %209 = vsyncpa [#allocation3], 1
    %210 = vsyncpa [#allocation6], 1
    %211 = vsyncpa [#allocation9], 1
    %212 = vsyncpa [#allocation4], 1

</llo_original>
